<compile_context>
chip_gen: v7x
topology: tpu7x:2x2x1
jax: 0.10.0
libtpu: 0.0.40
codegen_flags: <defaults>
</compile_context>

<pallas_src>
import functools

import jax
import jax.numpy as jnp
from jax.experimental import pallas as pl
from jax.experimental.pallas import tpu as pltpu

_LANE = 128
_DEFAULT_TILE_B = 32768            # amortizes the ~0.35us fixed per-grid-step overhead
_XLA_FALLBACK_ROWS = 2048          # below this, plain XLA is strictly faster
_VMEM_BUDGET_BYTES = 20 * 1024 * 1024   # per-step working-set target (safe on v5e/v6e/v7x)
_VMEM_LIMIT_BYTES = 32 * 1024 * 1024    # scoped VMEM limit handed to Mosaic
_SINGLE_BUFFER_WEIGHTS_MIN_N = 512      # only bother dropping weight double-buffering for big N


def _round_up(n, m):
    return ((n + m - 1) // m) * m


def _vmem_bytes_estimate(tb, n):
    io = 2 * (3 + 2) * tb * 4          # double-buffered x / out tiles
    act = 2 * n * tb * 4               # layer-1 activation temp (+ slack for other temps)
    wts = 4 * (n * 3 + n + 2 * n + 2) * 4
    return io + act + wts


def _pick_tile(batch, n, tile_b):
    """Lane-dense batch tile: as large as fits the VMEM budget, >=2 tiles when possible."""
    b128 = _round_up(max(batch, 1), _LANE)
    tb = min(_round_up(tile_b, _LANE), b128)
    while tb > _LANE and _vmem_bytes_estimate(tb, n) > _VMEM_BUDGET_BYTES:
        tb = _round_up(tb // 2, _LANE)
    # v7x megacore: ensure the "parallel" grid axis has >= 2 tiles so both TensorCores
    # get work (a single extra, still-large step is harmless on 1-TC v5e/v6e).
    if b128 >= 2 * _LANE and pl.cdiv(b128, tb) < 2:
        tb = _round_up(pl.cdiv(b128, 2), _LANE)
    return tb


def mynet_kernel(x_ref, w1_ref, b1_ref, w2_ref, b2_ref, o_ref):
    # x: [3, TB]  w1: [N, 3]  b1: [N, 1]  w2: [2, N]  b2: [2, 1]  o: [2, TB]
    x = x_ref[...]
    w1 = w1_ref[...]

    # Layer 1: K=3 contraction as 3 broadcast FMAs on the VPU (avoids a padded MXU pass).
    h = w1[:, 0:1] * x[0:1, :]
    h = h + w1[:, 1:2] * x[1:2, :]
    h = h + w1[:, 2:3] * x[2:3, :]
    h = jnp.maximum(h + b1_ref[...], 0.0)  # [N, TB], ReLU

    # Layer 2: K=N contraction on the MXU; batch stays on the lane axis (lane-dense out).
    # The MXU is otherwise idle here, so this co-issues with the VPU work for free.
    out = jnp.dot(w2_ref[...], h, preferred_element_type=jnp.float32) + b2_ref[...]
    o_ref[...] = out.astype(o_ref.dtype)


def mynet_forward_feature_major(x_fm, w1, b1, w2, b2, *, tile_b=_DEFAULT_TILE_B):
    """Core entry point. x_fm: [3, B] f32; returns [2, B] f32 (no transposes, no padding)."""
    B = x_fm.shape[1]
    N = w1.shape[0]

    tb = _pick_tile(B, N, tile_b)
    grid = pl.cdiv(B, tb)  # last block may be partial: Pallas clips the writeback in-bounds

    # Weight/bias block index never changes; for large N skip pointless double-buffering.
    weight_kwargs = {}
    if N >= _SINGLE_BUFFER_WEIGHTS_MIN_N:
        weight_kwargs = dict(pipeline_mode=pl.Buffered(1))

    def w_spec(shape):
        return pl.BlockSpec(shape, lambda i: (0, 0), **weight_kwargs)

    return pl.pallas_call(
        mynet_kernel,
        out_shape=jax.ShapeDtypeStruct((2, B), jnp.float32),
        grid=(grid,),
        in_specs=[
            pl.BlockSpec((3, tb), lambda i: (0, i)),   # x tile walks the batch (lane) axis
            w_spec((N, 3)),                            # weights / biases stay VMEM-resident
            w_spec((N, 1)),
            w_spec((2, N)),
            w_spec((2, 1)),
        ],
        out_specs=pl.BlockSpec((2, tb), lambda i: (0, i)),
        compiler_params=pltpu.CompilerParams(
            dimension_semantics=("parallel",),          # shard batch tiles across TCs on v7x
            vmem_limit_bytes=_VMEM_LIMIT_BYTES,
        ),
    )(x_fm, w1, b1.reshape(N, 1), w2, b2.reshape(2, 1))


@functools.partial(jax.jit, static_argnames=("tile_b", "xla_fallback_rows"))
def mynet_forward(x, w1, b1, w2, b2, *, tile_b=_DEFAULT_TILE_B,
                  xla_fallback_rows=_XLA_FALLBACK_ROWS):
    """PyTorch-convention entry. x: [B, 3] f32; w1: [N, 3]; b1: [N]; w2: [2, N]; b2: [2].

    Returns [B, 2] f32.
    """
    B = x.shape[0]

    # Small-batch fast path: at a few hundred/thousand rows the transposes + kernel launch
    # cost more than the math itself; one fused XLA path is strictly faster there.
    if B <= xla_fallback_rows:
        return reference_forward(x, w1, b1, w2, b2)

    # TODO(synk): callers that can produce x feature-major should call
    # mynet_forward_feature_major directly and skip both transpose passes.
    out_fm = mynet_forward_feature_major(x.T, w1, b1, w2, b2, tile_b=tile_b)
    return out_fm.T


def init_params(key, neurons):
    """Deterministic init matching nn.Linear shapes (weights in PyTorch [out, in] layout)."""
    k1, k2, k3, k4 = jax.random.split(key, 4)
    bound1 = 1.0 / jnp.sqrt(3.0)
    bound2 = 1.0 / jnp.sqrt(float(neurons))
    w1 = jax.random.uniform(k1, (neurons, 3), jnp.float32, -bound1, bound1)
    b1 = jax.random.uniform(k2, (neurons,), jnp.float32, -bound1, bound1)
    w2 = jax.random.uniform(k3, (2, neurons), jnp.float32, -bound2, bound2)
    b2 = jax.random.uniform(k4, (2,), jnp.float32, -bound2, bound2)
    return w1, b1, w2, b2


def reference_forward(x, w1, b1, w2, b2):
    h = jnp.maximum(x @ w1.T + b1, 0.0)
    return h @ w2.T + b2


if __name__ == "__main__":
    neurons = 32
    key = jax.random.PRNGKey(0)
    kx, kp = jax.random.split(key)
    w1, b1, w2, b2 = init_params(kp, neurons)

    # 1) Tiny batch, Pallas path forced: one partial tile (boundary-clipped writeback).
    x_small = jax.random.normal(kx, (8, 3), jnp.float32)
    out_small = jax.block_until_ready(
        mynet_forward(x_small, w1, b1, w2, b2, xla_fallback_rows=0))
    ref_small = reference_forward(x_small, w1, b1, w2, b2)
    assert out_small.shape == (8, 2)
    assert jnp.allclose(out_small, ref_small, atol=1e-5, rtol=1e-5)

    # 2) Multi-tile batch with a ragged tail: 600 rows, 256-wide tiles -> 3 tiles, last partial.
    x_mid = jax.random.normal(kx, (600, 3), jnp.float32)
    out_mid = jax.block_until_ready(
        mynet_forward(x_mid, w1, b1, w2, b2, tile_b=256, xla_fallback_rows=0))
    ref_mid = reference_forward(x_mid, w1, b1, w2, b2)
    assert out_mid.shape == (600, 2)
    assert jnp.allclose(out_mid, ref_mid, atol=1e-5, rtol=1e-5)

    # 3) Default dispatch at tiny batch takes the XLA fast path (same numerics).
    out_fast = jax.block_until_ready(mynet_forward(x_small, w1, b1, w2, b2))
    assert jnp.allclose(out_fast, ref_small, atol=1e-5, rtol=1e-5)

    print("KERNEL_OK")
</pallas_src>

<mosaic_0001>
module attributes {stable_mosaic.version = 11 : i64} {
  func.func @mynet_kernel(%arg0: i32, %arg1: memref<3x128xf32, #tpu.memory_space<vmem>>, %arg2: memref<32x3xf32, #tpu.memory_space<vmem>>, %arg3: memref<32x1xf32, #tpu.memory_space<vmem>>, %arg4: memref<2x32xf32, #tpu.memory_space<vmem>>, %arg5: memref<2x1xf32, #tpu.memory_space<vmem>>, %arg6: memref<2x128xf32, #tpu.memory_space<vmem>>) attributes {dimension_semantics = [#tpu.dimension_semantics<parallel>], iteration_bounds = array<i64: 1>, scalar_prefetch = 0 : i64, scratch_operands = 0 : i64, tpu.core_type = #tpu.core_type<tc>, window_params = [{transform_indices = @transform_0, window_bounds = array<i64: 3, 128>}, {pipeline_mode = #tpu.pipeline_mode<synchronous>, transform_indices = @transform_1, window_bounds = array<i64: 32, 3>}, {pipeline_mode = #tpu.pipeline_mode<synchronous>, transform_indices = @transform_2, window_bounds = array<i64: 32, 1>}, {pipeline_mode = #tpu.pipeline_mode<synchronous>, transform_indices = @transform_3, window_bounds = array<i64: 2, 32>}, {pipeline_mode = #tpu.pipeline_mode<synchronous>, transform_indices = @transform_4, window_bounds = array<i64: 2, 1>}, {transform_indices = @transform_5, window_bounds = array<i64: 2, 128>}]} {
    %c0 = arith.constant 0 : index
    %c0_0 = arith.constant 0 : index
    %0 = vector.load %arg1[%c0, %c0_0] : memref<3x128xf32, #tpu.memory_space<vmem>>, vector<3x128xf32>
    %c0_1 = arith.constant 0 : index
    %c0_2 = arith.constant 0 : index
    %1 = vector.load %arg2[%c0_1, %c0_2] : memref<32x3xf32, #tpu.memory_space<vmem>>, vector<32x3xf32>
    %2 = vector.extract_strided_slice %1 {offsets = [0, 0], sizes = [32, 1], strides = [1, 1]} : vector<32x3xf32> to vector<32x1xf32>
    %3 = vector.extract_strided_slice %0 {offsets = [0, 0], sizes = [1, 128], strides = [1, 1]} : vector<3x128xf32> to vector<1x128xf32>
    %4 = vector.broadcast %2 : vector<32x1xf32> to vector<32x128xf32>
    %5 = vector.broadcast %3 : vector<1x128xf32> to vector<32x128xf32>
    %6 = arith.mulf %4, %5 : vector<32x128xf32>
    %7 = vector.extract_strided_slice %1 {offsets = [0, 1], sizes = [32, 1], strides = [1, 1]} : vector<32x3xf32> to vector<32x1xf32>
    %8 = vector.extract_strided_slice %0 {offsets = [1, 0], sizes = [1, 128], strides = [1, 1]} : vector<3x128xf32> to vector<1x128xf32>
    %9 = vector.broadcast %7 : vector<32x1xf32> to vector<32x128xf32>
    %10 = vector.broadcast %8 : vector<1x128xf32> to vector<32x128xf32>
    %11 = arith.mulf %9, %10 : vector<32x128xf32>
    %12 = arith.addf %6, %11 : vector<32x128xf32>
    %13 = vector.extract_strided_slice %1 {offsets = [0, 2], sizes = [32, 1], strides = [1, 1]} : vector<32x3xf32> to vector<32x1xf32>
    %14 = vector.extract_strided_slice %0 {offsets = [2, 0], sizes = [1, 128], strides = [1, 1]} : vector<3x128xf32> to vector<1x128xf32>
    %15 = vector.broadcast %13 : vector<32x1xf32> to vector<32x128xf32>
    %16 = vector.broadcast %14 : vector<1x128xf32> to vector<32x128xf32>
    %17 = arith.mulf %15, %16 : vector<32x128xf32>
    %18 = arith.addf %12, %17 : vector<32x128xf32>
    %c0_3 = arith.constant 0 : index
    %c0_4 = arith.constant 0 : index
    %19 = vector.load %arg3[%c0_3, %c0_4] : memref<32x1xf32, #tpu.memory_space<vmem>>, vector<32x1xf32>
    %20 = vector.broadcast %19 : vector<32x1xf32> to vector<32x128xf32>
    %21 = arith.addf %18, %20 : vector<32x128xf32>
    %cst = arith.constant 0.000000e+00 : f32
    %22 = vector.broadcast %cst : f32 to vector<32x128xf32>
    %23 = arith.maximumf %21, %22 : vector<32x128xf32>
    %c0_5 = arith.constant 0 : index
    %c0_6 = arith.constant 0 : index
    %24 = vector.load %arg4[%c0_5, %c0_6] : memref<2x32xf32, #tpu.memory_space<vmem>>, vector<2x32xf32>
    %cst_7 = arith.constant dense<0.000000e+00> : vector<2x128xf32>
    %25 = tpu.matmul %24, %23, %cst_7 {dimension_numbers = #tpu.dot_dimension_numbers<[1], [0], [0], [1], [0, 0, 1, 1], [], []>} : vector<2x32xf32>, vector<32x128xf32>, vector<2x128xf32> -> vector<2x128xf32>
    %c0_8 = arith.constant 0 : index
    %c0_9 = arith.constant 0 : index
    %26 = vector.load %arg5[%c0_8, %c0_9] : memref<2x1xf32, #tpu.memory_space<vmem>>, vector<2x1xf32>
    %27 = vector.broadcast %26 : vector<2x1xf32> to vector<2x128xf32>
    %28 = arith.addf %25, %27 : vector<2x128xf32>
    %c0_10 = arith.constant 0 : index
    %c0_11 = arith.constant 0 : index
    %29 = vector.load %arg6[%c0_10, %c0_11] : memref<2x128xf32, #tpu.memory_space<vmem>>, vector<2x128xf32>
    tpu.vector_store %arg6[%c0_10, %c0_11], %28 {strides = array<i32>} : memref<2x128xf32, #tpu.memory_space<vmem>>, vector<2x128xf32>,
    return
  }
  func.func @transform_0(%arg0: i32) -> (i32, i32) {
    %c0_i32 = arith.constant 0 : i32
    %c0_i32_0 = arith.constant 0 : i32
    return %c0_i32, %arg0 : i32, i32
  }
  func.func @transform_1(%arg0: i32) -> (i32, i32) {
    %c0_i32 = arith.constant 0 : i32
    %c0_i32_0 = arith.constant 0 : i32
    %c0_i32_1 = arith.constant 0 : i32
    return %c0_i32, %c0_i32_0 : i32, i32
  }
  func.func @transform_2(%arg0: i32) -> (i32, i32) {
    %c0_i32 = arith.constant 0 : i32
    %c0_i32_0 = arith.constant 0 : i32
    %c0_i32_1 = arith.constant 0 : i32
    return %c0_i32, %c0_i32_0 : i32, i32
  }
  func.func @transform_3(%arg0: i32) -> (i32, i32) {
    %c0_i32 = arith.constant 0 : i32
    %c0_i32_0 = arith.constant 0 : i32
    %c0_i32_1 = arith.constant 0 : i32
    return %c0_i32, %c0_i32_0 : i32, i32
  }
  func.func @transform_4(%arg0: i32) -> (i32, i32) {
    %c0_i32 = arith.constant 0 : i32
    %c0_i32_0 = arith.constant 0 : i32
    %c0_i32_1 = arith.constant 0 : i32
    return %c0_i32, %c0_i32_0 : i32, i32
  }
  func.func @transform_5(%arg0: i32) -> (i32, i32) {
    %c0_i32 = arith.constant 0 : i32
    %c0_i32_0 = arith.constant 0 : i32
    return %c0_i32, %arg0 : i32, i32
  }
}

</mosaic_0001>

<llo_original>
// kernel: mynet_forward.1
$region0: #{mynet_forward.1}
  #allocation0 [shape = 'u32[]', space=smem, size = 0x4, offset = 0x4, fixed_abs, tag = 'smem constant byte address 0x4 - core index']
  #allocation1 [shape = 'u32[144,128]{1,0:T(1,128)}', space=vmem, size = 0x12000, scoped, tag = 'internal scratch']
  %s0 = inlined_call_operand.vmem [shape: f32[3,8], index: 0, kind: input, shape index: {}]
  %s1 = inlined_call_operand.vmem [shape: f32[32,3], index: 1, kind: input, shape index: {}]
  %s2 = inlined_call_operand.vmem [shape: f32[32,1], index: 2, kind: input, shape index: {}]
  %s3 = inlined_call_operand.vmem [shape: f32[2,32], index: 3, kind: input, shape index: {}]
  %s4 = inlined_call_operand.vmem [shape: f32[2,1], index: 4, kind: input, shape index: {}]
  %s5 = inlined_call_operand.hbm [shape: f32[2,8], index: 5, kind: output, shape index: {}]
  %s6 = sld [smem:[#allocation0]]
  $region30: #{mynet_forward.1} parent=0
    _
  %s8 = ssub.s32 1, %s6
  %s9 = scalar_select 0, %s8, %s6
  $region1: #{mynet_forward.1} parent=0
    #allocation2 [shape = 'u8[1024]{0}', space=vmem, size = 0x400, scoped, tag = 'output window, operand 0, single buffered']
    #allocation3 [shape = 's32[1]{0}', space=sflag, size = 0x4, scoped, tag = 'scoped memory for mynet_forward.1']
    %10 = vsyncpa [#allocation3], 0
    // Predicated region
    $region2: #{mynet_forward.1} parent=1 // pred_check
      _
    $region3: #{mynet_forward.1} parent=1 // pred_check_branch
      %12 = sbr.rel (0) target = $region5
    $region4: #{mynet_forward.1} parent=1 // pred_region
      _
    $region5: #{mynet_forward.1} parent=1 // pred_fallthru
      _
    // Predicated region
    $region6: #{mynet_forward.1} parent=1 // pred_check
      _
    $region7: #{mynet_forward.1} parent=1 // pred_check_branch
      %14 = sbr.rel (0) target = $region9
    $region8: #{mynet_forward.1} parent=1 // pred_region
      _
    $region9: #{mynet_forward.1} parent=1 // pred_fallthru
      _
    // Predicated region
    $region10: #{mynet_forward.1} parent=1 // pred_check
      _
    $region11: #{mynet_forward.1} parent=1 // pred_check_branch
      %16 = sbr.rel (0) target = $region13
    $region12: #{mynet_forward.1} parent=1 // pred_region
      _
    $region13: #{mynet_forward.1} parent=1 // pred_fallthru
      _
    // Predicated region
    $region14: #{mynet_forward.1} parent=1 // pred_check
      _
    $region15: #{mynet_forward.1} parent=1 // pred_check_branch
      %18 = sbr.rel (0) target = $region17
    $region16: #{mynet_forward.1} parent=1 // pred_region
      _
    $region17: #{mynet_forward.1} parent=1 // pred_fallthru
      _
    // Predicated region
    $region18: #{mynet_forward.1} parent=1 // pred_check
      _
    $region19: #{mynet_forward.1} parent=1 // pred_check_branch
      %20 = sbr.rel (0) target = $region21
    $region20: #{mynet_forward.1} parent=1 // pred_region
      _
    $region21: #{mynet_forward.1} parent=1 // pred_fallthru
      _
    %v21 = vld [vmem:[%s0] sm:$0x7]
    %v22 = vld [vmem:[%s1] sm:$0xff]
    %v23 = vld [vmem:[%s1 + $0x8] sm:$0xff]
    %v24 = vld [vmem:[%s1 + $0x10] sm:$0xff]
    %v25 = vld [vmem:[%s1 + $0x18] sm:$0xff]
    %27 = vset.pattern.permute.xlu0 0
    %28 = vperm.xlu0 %27, %v22
    %v29 = vpop.permute.xlu0 %28
    %32 = vset.pattern.permute.xlu0 0
    %33 = vperm.xlu0 %32, %v23
    %v34 = vpop.permute.xlu0 %33
    %37 = vset.pattern.permute.xlu0 0
    %38 = vperm.xlu0 %37, %v24
    %v39 = vpop.permute.xlu0 %38
    %42 = vset.pattern.permute.xlu0 0
    %43 = vperm.xlu0 %42, %v25
    %v44 = vpop.permute.xlu0 %43
    %v46 = vlaneseq
    %v47 = vshrl.u32 %v46, 7
    %v48 = vsub.s32 0, %v47
    %v49 = vrot.slane %v21, %v48
    %v50 = vmul.f32 %v29, %v49
    %v51 = vmul.f32 %v34, %v49
    %v52 = vmul.f32 %v39, %v49
    %v53 = vmul.f32 %v44, %v49
    %54 = vset.pattern.permute.xlu0 1
    %55 = vperm.xlu0 %54, %v22
    %v56 = vpop.permute.xlu0 %55
    %58 = vset.pattern.permute.xlu0 1
    %59 = vperm.xlu0 %58, %v23
    %v60 = vpop.permute.xlu0 %59
    %62 = vset.pattern.permute.xlu0 1
    %63 = vperm.xlu0 %62, %v24
    %v64 = vpop.permute.xlu0 %63
    %66 = vset.pattern.permute.xlu0 1
    %67 = vperm.xlu0 %66, %v25
    %v68 = vpop.permute.xlu0 %67
    %v70 = vlaneseq
    %v71 = vshrl.u32 %v70, 7
    %v72 = vsub.s32 1, %v71
    %v73 = vrot.slane %v21, %v72
    %v74 = vmul.f32 %v56, %v73
    %v75 = vmul.f32 %v60, %v73
    %v76 = vmul.f32 %v64, %v73
    %v77 = vmul.f32 %v68, %v73
    %v78 = vadd.f32 %v50, %v74
    %v79 = vadd.f32 %v51, %v75
    %v80 = vadd.f32 %v52, %v76
    %v81 = vadd.f32 %v53, %v77
    %82 = vset.pattern.permute.xlu0 2
    %83 = vperm.xlu0 %82, %v22
    %v84 = vpop.permute.xlu0 %83
    %86 = vset.pattern.permute.xlu0 2
    %87 = vperm.xlu0 %86, %v23
    %v88 = vpop.permute.xlu0 %87
    %90 = vset.pattern.permute.xlu0 2
    %91 = vperm.xlu0 %90, %v24
    %v92 = vpop.permute.xlu0 %91
    %94 = vset.pattern.permute.xlu0 2
    %95 = vperm.xlu0 %94, %v25
    %v96 = vpop.permute.xlu0 %95
    %v98 = vlaneseq
    %v99 = vshrl.u32 %v98, 7
    %v100 = vsub.s32 2, %v99
    %v101 = vrot.slane %v21, %v100
    %v102 = vmul.f32 %v84, %v101
    %v103 = vmul.f32 %v88, %v101
    %v104 = vmul.f32 %v92, %v101
    %v105 = vmul.f32 %v96, %v101
    %v106 = vadd.f32 %v78, %v102
    %v107 = vadd.f32 %v79, %v103
    %v108 = vadd.f32 %v80, %v104
    %v109 = vadd.f32 %v81, %v105
    %v110 = vld [vmem:[%s2] sm:$0xff]
    %v111 = vld [vmem:[%s2 + $0x8] sm:$0xff]
    %v112 = vld [vmem:[%s2 + $0x10] sm:$0xff]
    %v113 = vld [vmem:[%s2 + $0x18] sm:$0xff]
    %115 = vset.pattern.permute.xlu0 0
    %116 = vperm.xlu0 %115, %v110
    %v117 = vpop.permute.xlu0 %116
    %120 = vset.pattern.permute.xlu0 0
    %121 = vperm.xlu0 %120, %v111
    %v122 = vpop.permute.xlu0 %121
    %125 = vset.pattern.permute.xlu0 0
    %126 = vperm.xlu0 %125, %v112
    %v127 = vpop.permute.xlu0 %126
    %130 = vset.pattern.permute.xlu0 0
    %131 = vperm.xlu0 %130, %v113
    %v132 = vpop.permute.xlu0 %131
    %v134 = vadd.f32 %v106, %v117
    %v135 = vadd.f32 %v107, %v122
    %v136 = vadd.f32 %v108, %v127
    %v137 = vadd.f32 %v109, %v132
    %v138 = vmax.f32 %v134, 0.0
    %v139 = vmax.f32 %v135, 0.0
    %v140 = vmax.f32 %v136, 0.0
    %v141 = vmax.f32 %v137, 0.0
    %v142 = vld [vmem:[%s3] sm:$0x3]
    %v143 = vld [vmem:[%s4] sm:$0x3]
    %145 = vset.pattern.permute.xlu0 0
    %146 = vperm.xlu0 %145, %v143
    %v147 = vpop.permute.xlu0 %146
    %vm149 = vcmask 261120
    %v151 = vsel %vm149, %v142, 0
    %153 = vmatprep.subr.mxu0 0.0
    %154 = vmatpush1.msra.mxu0 %v138
    %155 = vmatprep.subr.mxu0 0.0
    %156 = vmatpush1.msra.mxu0 %v139
    %157 = vmatprep.subr.mxu0 0.0
    %158 = vmatpush1.msra.mxu0 %v140
    %159 = vmatprep.subr.mxu0 0.0
    %160 = vmatpush1.msra.mxu0 %v141
    %161 = vmatprep.subr.mxu0 0.0
    %162 = vmatpush1.msra.mxu0 0.0
    %163 = vmatprep.subr.mxu0 0.0
    %164 = vmatpush1.msra.mxu0 0.0
    %165 = vmatprep.subr.mxu0 0.0
    %166 = vmatpush1.msra.mxu0 0.0
    %167 = vmatprep.subr.mxu0 0.0
    %168 = vmatpush1.msra.mxu0 0.0
    %169 = vmatprep.subr.mxu0 0.0
    %170 = vmatpush1.msra.mxu0 0.0
    %171 = vmatprep.subr.mxu0 0.0
    %172 = vmatpush1.msra.mxu0 0.0
    %173 = vmatprep.subr.mxu0 0.0
    %174 = vmatpush1.msra.mxu0 0.0
    %175 = vmatprep.subr.mxu0 0.0
    %176 = vmatpush1.msra.mxu0 0.0
    %177 = vmatprep.subr.mxu0 0.0
    %178 = vmatpush1.msra.mxu0 0.0
    %179 = vmatprep.subr.mxu0 0.0
    %180 = vmatpush1.msra.mxu0 0.0
    %181 = vmatprep.subr.mxu0 0.0
    %182 = vmatpush1.msra.mxu0 0.0
    %183 = vmatprep.subr.mxu0 0.0
    %184 = vmatpush1.msra.mxu0 0.0
    %185 = vmatprep.subr.mxu0 0.0
    %186 = vmatpush1.msra.mxu0 0.0
    %187 = vmatprep.subr.mxu0 0.0
    %188 = vmatpush1.msra.mxu0 0.0
    %189 = vmatprep.subr.mxu0 0.0
    %190 = vmatpush1.msra.mxu0 0.0
    %191 = vmatprep.subr.mxu0 0.0
    %192 = vmatpush1.msra.mxu0 0.0
    %193 = vmatprep.subr.mxu0 0.0
    %194 = vmatpush1.msra.mxu0 0.0
    %195 = vmatprep.subr.mxu0 0.0
    %196 = vmatpush1.msra.mxu0 0.0
    %197 = vmatprep.subr.mxu0 0.0
    %198 = vmatpush1.msra.mxu0 0.0
    %199 = vmatprep.subr.mxu0 0.0
    %200 = vmatpush1.msra.mxu0 0.0
    %201 = vmatprep.subr.mxu0 0.0
    %202 = vmatpush1.msra.mxu0 0.0
    %203 = vmatprep.subr.mxu0 0.0
    %204 = vmatpush1.msra.mxu0 0.0
    %205 = vmatprep.subr.mxu0 0.0
    %206 = vmatpush1.msra.mxu0 0.0
    %207 = vmatprep.subr.mxu0 0.0
    %208 = vmatpush1.msra.mxu0 0.0
    %209 = vmatprep.subr.mxu0 0.0
    %210 = vmatpush1.msra.mxu0 0.0
    %211 = vmatprep.subr.mxu0 0.0
    %212 = vmatpush1.msra.mxu0 0.0
    %213 = vmatprep.subr.mxu0 0.0
    %214 = vmatpush1.msra.mxu0 0.0
    %215 = vmatprep.subr.mxu0 0.0
    %216 = vmatpush1.msra.mxu0 0.0
    %217 = vmatprep.mubr.f32.mxu0 0.0
    %218 = vmatmul.mubr.f32.gmra.mrb[0].mxu0 %v151
    %v219 = vpop.f32.mrb[0].mxu0
    %v220 = vadd.f32 %v147, %v219
    %v221 = vpop.f32.mrb[0].mxu0
    %222 = vdwg.mxu0
    %223 = vst [vmem:[#allocation2] sm:$0x3] %v220
    // Predicated region
    $region22: #{mynet_forward.1} parent=1 // pred_check
      _
    $region23: #{mynet_forward.1} parent=1 // pred_check_branch
      %225 = sbr.rel (0) target = $region25
    $region24: #{mynet_forward.1} parent=1 // pred_region
      %s227 = ssub.s32 32, 32
      %228 = vsyncadd [#allocation3], %s227
      %s230 = sshll.u32 [#allocation2], 4
      %s231 = int_to_ptr.vmem [resolvable:$true] %s230
      %233 = dma.vmem_to_hbm [thread:$0]  %s231, 32, %s5, [#allocation3]
    $region25: #{mynet_forward.1} parent=1 // pred_fallthru
      _
    // Predicated region
    $region26: #{mynet_forward.1} parent=1 // pred_check
      _
    $region27: #{mynet_forward.1} parent=1 // pred_check_branch
      %235 = sbr.rel (0) target = $region29
    $region28: #{mynet_forward.1} parent=1 // pred_region
      %236 = dma.done [#allocation3], 32
    $region29: #{mynet_forward.1} parent=1 // pred_fallthru
      _
    %237 = vsyncpa [#allocation3], 1

</llo_original>
